<compile_context>
chip_gen: v5e
topology: v5e:2x2
jax: 0.10.0
libtpu: 0.0.40
codegen_flags: <defaults>
</compile_context>

<pallas_src>
import functools

import jax
import jax.numpy as jnp
from jax import lax
from jax.experimental import pallas as pl
from jax.experimental.pallas import tpu as pltpu


def _round_up(n, m):
    return ((n + m - 1) // m) * m


def _cdiv(a, b):
    return (a + b - 1) // b


def _choose_batch_tiling(batch, tile_b, min_tiles=2):
    """Balanced batch tiling: rows per tile (mult of 8), padded batch, #tiles."""
    b8 = _round_up(batch, 8)
    max_tiles = max(1, b8 // 8)                  # cannot have tiles < 8 rows
    target = max(min_tiles, _cdiv(batch, tile_b))  # >=2 tiles feeds both v7x TCs
    target = max(1, min(target, max_tiles))
    tb = _round_up(_cdiv(batch, target), 8)
    n_tiles = _cdiv(batch, tb)
    b_p = n_tiles * tb
    return tb, b_p, n_tiles


def _fcnn_kernel(*refs, num_mid, activation):
    """Fused fc1 -> (fc)*num_mid -> fc2 on one batch tile (all weights resident)."""
    if num_mid > 0:
        (x_ref, w1_ref, b1_ref, wm_ref, bm_ref,
         w2_ref, b2_ref, o_ref, h_ref) = refs
    else:
        (x_ref, w1_ref, b1_ref, w2_ref, b2_ref, o_ref, h_ref) = refs
        wm_ref = bm_ref = None

    if activation == "tanh":
        act = jnp.tanh
    elif activation == "relu":
        act = lambda v: jnp.maximum(v, 0.0)
    else:
        raise ValueError(f"unsupported activation: {activation}")

    # Hoisted bias loads (f32): (1, F) rows broadcast over the batch tile.
    b1 = b1_ref[...]
    b2 = b2_ref[...]

    # Layer 1: (TILE_B, Fin) @ (Fin, H) + b1 -> VMEM-resident activation
    # (stored in compute dtype; accumulation / bias / activation in f32).
    h_ref[...] = act(
        jnp.dot(x_ref[...], w1_ref[...], preferred_element_type=jnp.float32) + b1
    ).astype(h_ref.dtype)

    # Middle layers: the SAME weight reused each iteration (matches the PyTorch
    # module, whose __init__ loop overwrites self.fc and forward reuses it).
    if num_mid > 0:
        bm = bm_ref[...]

        def body(_, carry):
            h_ref[...] = act(
                jnp.dot(h_ref[...], wm_ref[...],
                        preferred_element_type=jnp.float32) + bm
            ).astype(h_ref.dtype)
            return carry

        lax.fori_loop(0, num_mid, body, 0, unroll=(num_mid <= 8))

    # Output layer: no activation, f32 output.
    o_ref[...] = (
        jnp.dot(h_ref[...], w2_ref[...], preferred_element_type=jnp.float32) + b2
    ).astype(o_ref.dtype)


def prepare_fcnn_params(w1, b1, wm, bm, w2, b2, *, compute_dtype=jnp.float32):
    """One-time padding / dtype cast of the FCNN parameters (hoisted out of forward).

    w1: (Fin, H), b1: (H,)          -- fc1
    wm: (H, H) or None, bm: (H,)    -- shared middle fc (None when num_layers == 1)
    w2: (H, Out), b2: (Out,)        -- fc2
    """
    Fin, H = w1.shape
    Out = w2.shape[1]
    fin_p = _round_up(Fin, 128)
    h_p = _round_up(H, 128)
    out_p = _round_up(Out, 128)
    cd = jnp.dtype(compute_dtype)
    f32 = jnp.float32

    w1_p = jnp.zeros((fin_p, h_p), f32).at[:Fin, :H].set(w1).astype(cd)
    b1_p = jnp.zeros((1, h_p), f32).at[0, :H].set(b1)
    w2_p = jnp.zeros((h_p, out_p), f32).at[:H, :Out].set(w2).astype(cd)
    b2_p = jnp.zeros((1, out_p), f32).at[0, :Out].set(b2)
    if wm is not None:
        wm_p = jnp.zeros((h_p, h_p), f32).at[:H, :H].set(wm).astype(cd)
        bm_p = jnp.zeros((1, h_p), f32).at[0, :H].set(bm)
    else:
        wm_p = None
        bm_p = None

    return dict(w1=w1_p, b1=b1_p, wm=wm_p, bm=bm_p, w2=w2_p, b2=b2_p,
                dims=(Fin, H, Out), padded_dims=(fin_p, h_p, out_p),
                compute_dtype=cd)


def fcnn_forward(x, params, *, activation, num_layers, tile_b=512):
    """Fused FCNN forward. x: (B, Fin) f32 -> (B, Out) f32."""
    if activation not in ("tanh", "relu"):
        raise ValueError(f"unsupported activation: {activation}")

    B, Fin = x.shape
    fin_p, h_p, out_p = params["padded_dims"]
    cd = params["compute_dtype"]
    has_middle = (num_layers > 1) and (params["wm"] is not None)
    num_mid = (num_layers - 1) if has_middle else 0

    # Balanced batch tiling: >=2 tiles whenever B allows (v7x megacore),
    # minimal zero-row padding.
    tb, b_p, n_tiles = _choose_batch_tiling(B, tile_b)

    # Only x is padded per call (weights were prepared once).
    x_p = jnp.zeros((b_p, fin_p), cd).at[:B, :Fin].set(x.astype(cd))

    op_bytes = cd.itemsize
    scratch_dtype = cd  # bf16 scratch in bf16 mode; halves scratch VMEM + traffic

    # ---- VMEM budget (single-buffered weights, double-buffered x/out tiles) ----
    resident = op_bytes * (fin_p * h_p + h_p * out_p
                           + (h_p * h_p if has_middle else 0))
    resident += 4 * (h_p + out_p + (h_p if has_middle else 0))      # f32 biases
    resident += 2 * op_bytes * tb * fin_p                            # x tile x2
    resident += 2 * 4 * tb * out_p                                   # out tile x2
    resident += jnp.dtype(scratch_dtype).itemsize * tb * h_p         # h scratch
    vmem_limit = max(int(resident * 1.3) + (2 << 20), 16 << 20)
    vmem_limit = min(vmem_limit, 128 << 20)

    # ---- advisory cost estimate ----
    flops = 2 * b_p * (fin_p * h_p + num_mid * h_p * h_p + h_p * out_p)
    transcendentals = b_p * h_p * (1 + num_mid) if activation == "tanh" else 0
    bytes_accessed = (op_bytes * (b_p * fin_p + fin_p * h_p + h_p * out_p
                                  + (h_p * h_p if has_middle else 0))
                      + 4 * (h_p + out_p + (h_p if has_middle else 0))
                      + 4 * b_p * out_p)

    kernel = functools.partial(_fcnn_kernel, num_mid=num_mid,
                               activation=activation)

    args = [x_p, params["w1"], params["b1"]]
    if has_middle:
        args += [params["wm"], params["bm"]]
    args += [params["w2"], params["b2"]]

    def build_in_specs(single_buffer_weights):
        def resident_spec(shape):
            idx = lambda i: (0, 0)
            if single_buffer_weights:
                try:
                    # Grid-invariant: double-buffering buys nothing; halve VMEM.
                    return pl.BlockSpec(shape, idx, pipeline_mode=pl.Buffered(1))
                except TypeError:
                    pass
            return pl.BlockSpec(shape, idx)

        specs = [pl.BlockSpec((tb, fin_p), lambda i: (i, 0)),      # x tile
                 resident_spec((fin_p, h_p)),                      # w1
                 resident_spec((1, h_p))]                          # b1
        if has_middle:
            specs += [resident_spec((h_p, h_p)),                   # wm
                      resident_spec((1, h_p))]                     # bm
        specs += [resident_spec((h_p, out_p)),                     # w2
                  resident_spec((1, out_p))]                       # b2
        return specs

    def run(single_buffer_weights):
        return pl.pallas_call(
            kernel,
            out_shape=jax.ShapeDtypeStruct((b_p, out_p), jnp.float32),
            grid=(n_tiles,),
            in_specs=build_in_specs(single_buffer_weights),
            out_specs=pl.BlockSpec((tb, out_p), lambda i: (i, 0)),
            scratch_shapes=[pltpu.VMEM((tb, h_p), scratch_dtype)],
            compiler_params=pltpu.CompilerParams(
                dimension_semantics=("parallel",),   # batch tiles -> 2 TCs on v7x
                vmem_limit_bytes=int(vmem_limit)),
            cost_estimate=pl.CostEstimate(
                flops=int(flops), transcendentals=int(transcendentals),
                bytes_accessed=int(bytes_accessed)),
        )(*args)

    try:
        out = run(True)
    except Exception:
        # Fallback for configs that reject single-buffered (Buffered(1)) specs.
        out = run(False)

    # Padded rows/cols hold bias+activation garbage by construction; slice off.
    return out[:B, : params["dims"][2]]


class FCNNPallas:
    """Mirror of the PyTorch FCNN module, parameters initialized deterministically."""

    def __init__(self, input_size, hidden_size, output_size, activation,
                 num_layers=1, key=None, compute_dtype=jnp.float32, tile_b=512):
        if activation not in ("tanh", "relu"):
            raise ValueError(f"unsupported activation: {activation}")
        if key is None:
            key = jax.random.PRNGKey(0)
        k1, k2, k3, k4, k5, k6 = jax.random.split(key, 6)
        scale = 0.1
        # fc1: (input -> hidden)
        self.w1 = scale * jax.random.normal(k1, (input_size, hidden_size), jnp.float32)
        self.b1 = scale * jax.random.normal(k2, (hidden_size,), jnp.float32)
        # fc: (hidden -> hidden). Like the PyTorch code, a single fc layer is
        # created (the __init__ loop overwrites self.fc) and reused in forward.
        if num_layers > 1:
            self.wm = scale * jax.random.normal(k3, (hidden_size, hidden_size), jnp.float32)
            self.bm = scale * jax.random.normal(k4, (hidden_size,), jnp.float32)
        else:
            self.wm = None
            self.bm = None
        # fc2: (hidden -> output)
        self.w2 = scale * jax.random.normal(k5, (hidden_size, output_size), jnp.float32)
        self.b2 = scale * jax.random.normal(k6, (output_size,), jnp.float32)
        self.activation = activation
        self.num_layers = num_layers
        self.tile_b = tile_b
        # One-time padding / dtype cast of parameters (hoisted out of forward).
        self.params_p = prepare_fcnn_params(
            self.w1, self.b1, self.wm, self.bm, self.w2, self.b2,
            compute_dtype=compute_dtype)

    def __call__(self, x):
        return fcnn_forward(x, self.params_p, activation=self.activation,
                            num_layers=self.num_layers, tile_b=self.tile_b)


def _reference_forward(model, x):
    """Pure jnp reference for correctness checking."""
    def act(v):
        if model.activation == "tanh":
            return jnp.tanh(v)
        return jnp.maximum(v, 0.0)
    y = act(x @ model.w1 + model.b1)
    for _ in range(model.num_layers - 1):
        y = act(y @ model.wm + model.bm)
    return y @ model.w2 + model.b2


if __name__ == "__main__":
    key = jax.random.PRNGKey(0)
    kx, kp = jax.random.split(key)

    batch = 2
    input_size = 16
    hidden_size = 32
    output_size = 8
    num_layers = 3
    activation = "tanh"

    x = jax.random.normal(kx, (batch, input_size), jnp.float32)

    # 1) f32 path, tanh, 3 layers (shared middle fc).
    model = FCNNPallas(input_size, hidden_size, output_size, activation,
                       num_layers=num_layers, key=kp)
    out = jax.block_until_ready(model(x))
    ref = _reference_forward(model, x)
    assert out.shape == (batch, output_size)
    assert jnp.allclose(out, ref, atol=1e-5, rtol=1e-5), "f32 mismatch vs reference"

    # 2) num_layers == 1, relu (wm/bm skipped entirely: no BlockSpec, no DMA).
    model1 = FCNNPallas(input_size, hidden_size, output_size, "relu",
                        num_layers=1, key=kp)
    out1 = jax.block_until_ready(model1(x))
    ref1 = _reference_forward(model1, x)
    assert out1.shape == (batch, output_size)
    assert jnp.allclose(out1, ref1, atol=1e-5, rtol=1e-5), "1-layer mismatch vs reference"

    # 3) bf16 operand path (MXU-native on v5e/v6e/v7x); looser tolerance is the
    #    expected bf16 precision loss, not a kernel bug.
    model_bf16 = FCNNPallas(input_size, hidden_size, output_size, activation,
                            num_layers=num_layers, key=kp,
                            compute_dtype=jnp.bfloat16)
    out_bf16 = jax.block_until_ready(model_bf16(x))
    ref_bf16 = _reference_forward(model_bf16, x)
    assert out_bf16.shape == (batch, output_size)
    assert jnp.allclose(out_bf16, ref_bf16, atol=5e-2, rtol=5e-2), "bf16 mismatch vs reference"

    print("KERNEL_OK")
</pallas_src>

<mosaic_0001>
module attributes {stable_mosaic.version = 11 : i64} {
  func.func @_fcnn_kernel(%arg0: i32, %arg1: memref<8x128xf32, #tpu.memory_space<vmem>>, %arg2: memref<128x128xf32, #tpu.memory_space<vmem>>, %arg3: memref<1x128xf32, #tpu.memory_space<vmem>>, %arg4: memref<128x128xf32, #tpu.memory_space<vmem>>, %arg5: memref<1x128xf32, #tpu.memory_space<vmem>>, %arg6: memref<128x128xf32, #tpu.memory_space<vmem>>, %arg7: memref<1x128xf32, #tpu.memory_space<vmem>>, %arg8: memref<8x128xf32, #tpu.memory_space<vmem>>, %arg9: memref<8x128xf32, #tpu.memory_space<vmem>>) attributes {dimension_semantics = [#tpu.dimension_semantics<parallel>], iteration_bounds = array<i64: 1>, scalar_prefetch = 0 : i64, scratch_operands = 1 : i64, tpu.core_type = #tpu.core_type<tc>, window_params = [{transform_indices = @transform_0, window_bounds = array<i64: 8, 128>}, {pipeline_mode = #tpu.pipeline_mode<synchronous>, transform_indices = @transform_1, window_bounds = array<i64: 128, 128>}, {pipeline_mode = #tpu.pipeline_mode<synchronous>, transform_indices = @transform_2, window_bounds = array<i64: 1, 128>}, {pipeline_mode = #tpu.pipeline_mode<synchronous>, transform_indices = @transform_3, window_bounds = array<i64: 128, 128>}, {pipeline_mode = #tpu.pipeline_mode<synchronous>, transform_indices = @transform_4, window_bounds = array<i64: 1, 128>}, {pipeline_mode = #tpu.pipeline_mode<synchronous>, transform_indices = @transform_5, window_bounds = array<i64: 128, 128>}, {pipeline_mode = #tpu.pipeline_mode<synchronous>, transform_indices = @transform_6, window_bounds = array<i64: 1, 128>}, {transform_indices = @transform_7, window_bounds = array<i64: 8, 128>}]} {
    %c0 = arith.constant 0 : index
    %c0_0 = arith.constant 0 : index
    %0 = vector.load %arg3[%c0, %c0_0] : memref<1x128xf32, #tpu.memory_space<vmem>>, vector<1x128xf32>
    %c0_1 = arith.constant 0 : index
    %c0_2 = arith.constant 0 : index
    %1 = vector.load %arg7[%c0_1, %c0_2] : memref<1x128xf32, #tpu.memory_space<vmem>>, vector<1x128xf32>
    %c0_3 = arith.constant 0 : index
    %c0_4 = arith.constant 0 : index
    %2 = vector.load %arg1[%c0_3, %c0_4] : memref<8x128xf32, #tpu.memory_space<vmem>>, vector<8x128xf32>
    %c0_5 = arith.constant 0 : index
    %c0_6 = arith.constant 0 : index
    %3 = vector.load %arg2[%c0_5, %c0_6] : memref<128x128xf32, #tpu.memory_space<vmem>>, vector<128x128xf32>
    %cst = arith.constant dense<0.000000e+00> : vector<8x128xf32>
    %4 = tpu.matmul %2, %3, %cst {dimension_numbers = #tpu.dot_dimension_numbers<[1], [0], [0], [1], [0, 0, 1, 1], [], []>} : vector<8x128xf32>, vector<128x128xf32>, vector<8x128xf32> -> vector<8x128xf32>
    %5 = vector.broadcast %0 : vector<1x128xf32> to vector<8x128xf32>
    %6 = arith.addf %4, %5 : vector<8x128xf32>
    %7 = math.tanh %6 : vector<8x128xf32>
    %c0_7 = arith.constant 0 : index
    %c0_8 = arith.constant 0 : index
    %8 = vector.load %arg9[%c0_7, %c0_8] : memref<8x128xf32, #tpu.memory_space<vmem>>, vector<8x128xf32>
    tpu.vector_store %arg9[%c0_7, %c0_8], %7 {strides = array<i32>} : memref<8x128xf32, #tpu.memory_space<vmem>>, vector<8x128xf32>,
    %c0_9 = arith.constant 0 : index
    %c0_10 = arith.constant 0 : index
    %9 = vector.load %arg5[%c0_9, %c0_10] : memref<1x128xf32, #tpu.memory_space<vmem>>, vector<1x128xf32>
    %c0_i32 = arith.constant 0 : i32
    %c0_11 = arith.constant 0 : index
    %c0_12 = arith.constant 0 : index
    %10 = vector.load %arg9[%c0_11, %c0_12] : memref<8x128xf32, #tpu.memory_space<vmem>>, vector<8x128xf32>
    %c0_13 = arith.constant 0 : index
    %c0_14 = arith.constant 0 : index
    %11 = vector.load %arg4[%c0_13, %c0_14] : memref<128x128xf32, #tpu.memory_space<vmem>>, vector<128x128xf32>
    %cst_15 = arith.constant dense<0.000000e+00> : vector<8x128xf32>
    %12 = tpu.matmul %10, %11, %cst_15 {dimension_numbers = #tpu.dot_dimension_numbers<[1], [0], [0], [1], [0, 0, 1, 1], [], []>} : vector<8x128xf32>, vector<128x128xf32>, vector<8x128xf32> -> vector<8x128xf32>
    %13 = vector.broadcast %9 : vector<1x128xf32> to vector<8x128xf32>
    %14 = arith.addf %12, %13 : vector<8x128xf32>
    %15 = math.tanh %14 : vector<8x128xf32>
    %c0_16 = arith.constant 0 : index
    %c0_17 = arith.constant 0 : index
    %16 = vector.load %arg9[%c0_16, %c0_17] : memref<8x128xf32, #tpu.memory_space<vmem>>, vector<8x128xf32>
    tpu.vector_store %arg9[%c0_16, %c0_17], %15 {strides = array<i32>} : memref<8x128xf32, #tpu.memory_space<vmem>>, vector<8x128xf32>,
    %c1_i32 = arith.constant 1 : i32
    %c0_18 = arith.constant 0 : index
    %c0_19 = arith.constant 0 : index
    %17 = vector.load %arg9[%c0_18, %c0_19] : memref<8x128xf32, #tpu.memory_space<vmem>>, vector<8x128xf32>
    %c0_20 = arith.constant 0 : index
    %c0_21 = arith.constant 0 : index
    %18 = vector.load %arg4[%c0_20, %c0_21] : memref<128x128xf32, #tpu.memory_space<vmem>>, vector<128x128xf32>
    %cst_22 = arith.constant dense<0.000000e+00> : vector<8x128xf32>
    %19 = tpu.matmul %17, %18, %cst_22 {dimension_numbers = #tpu.dot_dimension_numbers<[1], [0], [0], [1], [0, 0, 1, 1], [], []>} : vector<8x128xf32>, vector<128x128xf32>, vector<8x128xf32> -> vector<8x128xf32>
    %20 = vector.broadcast %9 : vector<1x128xf32> to vector<8x128xf32>
    %21 = arith.addf %19, %20 : vector<8x128xf32>
    %22 = math.tanh %21 : vector<8x128xf32>
    %c0_23 = arith.constant 0 : index
    %c0_24 = arith.constant 0 : index
    %23 = vector.load %arg9[%c0_23, %c0_24] : memref<8x128xf32, #tpu.memory_space<vmem>>, vector<8x128xf32>
    tpu.vector_store %arg9[%c0_23, %c0_24], %22 {strides = array<i32>} : memref<8x128xf32, #tpu.memory_space<vmem>>, vector<8x128xf32>,
    %c0_25 = arith.constant 0 : index
    %c0_26 = arith.constant 0 : index
    %24 = vector.load %arg9[%c0_25, %c0_26] : memref<8x128xf32, #tpu.memory_space<vmem>>, vector<8x128xf32>
    %c0_27 = arith.constant 0 : index
    %c0_28 = arith.constant 0 : index
    %25 = vector.load %arg6[%c0_27, %c0_28] : memref<128x128xf32, #tpu.memory_space<vmem>>, vector<128x128xf32>
    %cst_29 = arith.constant dense<0.000000e+00> : vector<8x128xf32>
    %26 = tpu.matmul %24, %25, %cst_29 {dimension_numbers = #tpu.dot_dimension_numbers<[1], [0], [0], [1], [0, 0, 1, 1], [], []>} : vector<8x128xf32>, vector<128x128xf32>, vector<8x128xf32> -> vector<8x128xf32>
    %27 = vector.broadcast %1 : vector<1x128xf32> to vector<8x128xf32>
    %28 = arith.addf %26, %27 : vector<8x128xf32>
    %c0_30 = arith.constant 0 : index
    %c0_31 = arith.constant 0 : index
    %29 = vector.load %arg8[%c0_30, %c0_31] : memref<8x128xf32, #tpu.memory_space<vmem>>, vector<8x128xf32>
    tpu.vector_store %arg8[%c0_30, %c0_31], %28 {strides = array<i32>} : memref<8x128xf32, #tpu.memory_space<vmem>>, vector<8x128xf32>,
    return
  }
  func.func @transform_0(%arg0: i32) -> (i32, i32) {
    %c0_i32 = arith.constant 0 : i32
    %c0_i32_0 = arith.constant 0 : i32
    return %arg0, %c0_i32 : i32, i32
  }
  func.func @transform_1(%arg0: i32) -> (i32, i32) {
    %c0_i32 = arith.constant 0 : i32
    %c0_i32_0 = arith.constant 0 : i32
    %c0_i32_1 = arith.constant 0 : i32
    return %c0_i32, %c0_i32_0 : i32, i32
  }
  func.func @transform_2(%arg0: i32) -> (i32, i32) {
    %c0_i32 = arith.constant 0 : i32
    %c0_i32_0 = arith.constant 0 : i32
    %c0_i32_1 = arith.constant 0 : i32
    return %c0_i32, %c0_i32_0 : i32, i32
  }
  func.func @transform_3(%arg0: i32) -> (i32, i32) {
    %c0_i32 = arith.constant 0 : i32
    %c0_i32_0 = arith.constant 0 : i32
    %c0_i32_1 = arith.constant 0 : i32
    return %c0_i32, %c0_i32_0 : i32, i32
  }
  func.func @transform_4(%arg0: i32) -> (i32, i32) {
    %c0_i32 = arith.constant 0 : i32
    %c0_i32_0 = arith.constant 0 : i32
    %c0_i32_1 = arith.constant 0 : i32
    return %c0_i32, %c0_i32_0 : i32, i32
  }
  func.func @transform_5(%arg0: i32) -> (i32, i32) {
    %c0_i32 = arith.constant 0 : i32
    %c0_i32_0 = arith.constant 0 : i32
    %c0_i32_1 = arith.constant 0 : i32
    return %c0_i32, %c0_i32_0 : i32, i32
  }
  func.func @transform_6(%arg0: i32) -> (i32, i32) {
    %c0_i32 = arith.constant 0 : i32
    %c0_i32_0 = arith.constant 0 : i32
    %c0_i32_1 = arith.constant 0 : i32
    return %c0_i32, %c0_i32_0 : i32, i32
  }
  func.func @transform_7(%arg0: i32) -> (i32, i32) {
    %c0_i32 = arith.constant 0 : i32
    %c0_i32_0 = arith.constant 0 : i32
    return %arg0, %c0_i32 : i32, i32
  }
}

module attributes {stable_mosaic.version = 11 : i64} {
  func.func @_fcnn_kernel(%arg0: i32, %arg1: memref<8x128xf32, #tpu.memory_space<vmem>>, %arg2: memref<128x128xf32, #tpu.memory_space<vmem>>, %arg3: memref<1x128xf32, #tpu.memory_space<vmem>>, %arg4: memref<128x128xf32, #tpu.memory_space<vmem>>, %arg5: memref<1x128xf32, #tpu.memory_space<vmem>>, %arg6: memref<128x128xf32, #tpu.memory_space<vmem>>, %arg7: memref<1x128xf32, #tpu.memory_space<vmem>>, %arg8: memref<8x128xf32, #tpu.memory_space<vmem>>, %arg9: memref<8x128xf32, #tpu.memory_space<vmem>>) attributes {dimension_semantics = [#tpu.dimension_semantics<parallel>], iteration_bounds = array<i64: 1>, scalar_prefetch = 0 : i64, scratch_operands = 1 : i64, tpu.core_type = #tpu.core_type<tc>, window_params = [{transform_indices = @transform_0, window_bounds = array<i64: 8, 128>}, {pipeline_mode = #tpu.pipeline_mode<synchronous>, transform_indices = @transform_1, window_bounds = array<i64: 128, 128>}, {pipeline_mode = #tpu.pipeline_mode<synchronous>, transform_indices = @transform_2, window_bounds = array<i64: 1, 128>}, {pipeline_mode = #tpu.pipeline_mode<synchronous>, transform_indices = @transform_3, window_bounds = array<i64: 128, 128>}, {pipeline_mode = #tpu.pipeline_mode<synchronous>, transform_indices = @transform_4, window_bounds = array<i64: 1, 128>}, {pipeline_mode = #tpu.pipeline_mode<synchronous>, transform_indices = @transform_5, window_bounds = array<i64: 128, 128>}, {pipeline_mode = #tpu.pipeline_mode<synchronous>, transform_indices = @transform_6, window_bounds = array<i64: 1, 128>}, {transform_indices = @transform_7, window_bounds = array<i64: 8, 128>}]} {
    %c0 = arith.constant 0 : index
    %c0_0 = arith.constant 0 : index
    %0 = vector.load %arg3[%c0, %c0_0] : memref<1x128xf32, #tpu.memory_space<vmem>>, vector<1x128xf32>
    %c0_1 = arith.constant 0 : index
    %c0_2 = arith.constant 0 : index
    %1 = vector.load %arg7[%c0_1, %c0_2] : memref<1x128xf32, #tpu.memory_space<vmem>>, vector<1x128xf32>
    %c0_3 = arith.constant 0 : index
    %c0_4 = arith.constant 0 : index
    %2 = vector.load %arg1[%c0_3, %c0_4] : memref<8x128xf32, #tpu.memory_space<vmem>>, vector<8x128xf32>
    %c0_5 = arith.constant 0 : index
    %c0_6 = arith.constant 0 : index
    %3 = vector.load %arg2[%c0_5, %c0_6] : memref<128x128xf32, #tpu.memory_space<vmem>>, vector<128x128xf32>
    %cst = arith.constant dense<0.000000e+00> : vector<8x128xf32>
    %4 = tpu.matmul %2, %3, %cst {dimension_numbers = #tpu.dot_dimension_numbers<[1], [0], [0], [1], [0, 0, 1, 1], [], []>} : vector<8x128xf32>, vector<128x128xf32>, vector<8x128xf32> -> vector<8x128xf32>
    %5 = vector.broadcast %0 : vector<1x128xf32> to vector<8x128xf32>
    %6 = arith.addf %4, %5 : vector<8x128xf32>
    %7 = math.tanh %6 : vector<8x128xf32>
    %c0_7 = arith.constant 0 : index
    %c0_8 = arith.constant 0 : index
    %8 = vector.load %arg9[%c0_7, %c0_8] : memref<8x128xf32, #tpu.memory_space<vmem>>, vector<8x128xf32>
    tpu.vector_store %arg9[%c0_7, %c0_8], %7 {strides = array<i32>} : memref<8x128xf32, #tpu.memory_space<vmem>>, vector<8x128xf32>,
    %c0_9 = arith.constant 0 : index
    %c0_10 = arith.constant 0 : index
    %9 = vector.load %arg5[%c0_9, %c0_10] : memref<1x128xf32, #tpu.memory_space<vmem>>, vector<1x128xf32>
    %c0_i32 = arith.constant 0 : i32
    %c0_11 = arith.constant 0 : index
    %c0_12 = arith.constant 0 : index
    %10 = vector.load %arg9[%c0_11, %c0_12] : memref<8x128xf32, #tpu.memory_space<vmem>>, vector<8x128xf32>
    %c0_13 = arith.constant 0 : index
    %c0_14 = arith.constant 0 : index
    %11 = vector.load %arg4[%c0_13, %c0_14] : memref<128x128xf32, #tpu.memory_space<vmem>>, vector<128x128xf32>
    %cst_15 = arith.constant dense<0.000000e+00> : vector<8x128xf32>
    %12 = tpu.matmul %10, %11, %cst_15 {dimension_numbers = #tpu.dot_dimension_numbers<[1], [0], [0], [1], [0, 0, 1, 1], [], []>} : vector<8x128xf32>, vector<128x128xf32>, vector<8x128xf32> -> vector<8x128xf32>
    %13 = vector.broadcast %9 : vector<1x128xf32> to vector<8x128xf32>
    %14 = arith.addf %12, %13 : vector<8x128xf32>
    %15 = math.tanh %14 : vector<8x128xf32>
    %c0_16 = arith.constant 0 : index
    %c0_17 = arith.constant 0 : index
    %16 = vector.load %arg9[%c0_16, %c0_17] : memref<8x128xf32, #tpu.memory_space<vmem>>, vector<8x128xf32>
    tpu.vector_store %arg9[%c0_16, %c0_17], %15 {strides = array<i32>} : memref<8x128xf32, #tpu.memory_space<vmem>>, vector<8x128xf32>,
    %c1_i32 = arith.constant 1 : i32
    %c0_18 = arith.constant 0 : index
    %c0_19 = arith.constant 0 : index
    %17 = vector.load %arg9[%c0_18, %c0_19] : memref<8x128xf32, #tpu.memory_space<vmem>>, vector<8x128xf32>
    %c0_20 = arith.constant 0 : index
    %c0_21 = arith.constant 0 : index
    %18 = vector.load %arg4[%c0_20, %c0_21] : memref<128x128xf32, #tpu.memory_space<vmem>>, vector<128x128xf32>
    %cst_22 = arith.constant dense<0.000000e+00> : vector<8x128xf32>
    %19 = tpu.matmul %17, %18, %cst_22 {dimension_numbers = #tpu.dot_dimension_numbers<[1], [0], [0], [1], [0, 0, 1, 1], [], []>} : vector<8x128xf32>, vector<128x128xf32>, vector<8x128xf32> -> vector<8x128xf32>
    %20 = vector.broadcast %9 : vector<1x128xf32> to vector<8x128xf32>
    %21 = arith.addf %19, %20 : vector<8x128xf32>
    %22 = math.tanh %21 : vector<8x128xf32>
    %c0_23 = arith.constant 0 : index
    %c0_24 = arith.constant 0 : index
    %23 = vector.load %arg9[%c0_23, %c0_24] : memref<8x128xf32, #tpu.memory_space<vmem>>, vector<8x128xf32>
    tpu.vector_store %arg9[%c0_23, %c0_24], %22 {strides = array<i32>} : memref<8x128xf32, #tpu.memory_space<vmem>>, vector<8x128xf32>,
    %c0_25 = arith.constant 0 : index
    %c0_26 = arith.constant 0 : index
    %24 = vector.load %arg9[%c0_25, %c0_26] : memref<8x128xf32, #tpu.memory_space<vmem>>, vector<8x128xf32>
    %c0_27 = arith.constant 0 : index
    %c0_28 = arith.constant 0 : index
    %25 = vector.load %arg6[%c0_27, %c0_28] : memref<128x128xf32, #tpu.memory_space<vmem>>, vector<128x128xf32>
    %cst_29 = arith.constant dense<0.000000e+00> : vector<8x128xf32>
    %26 = tpu.matmul %24, %25, %cst_29 {dimension_numbers = #tpu.dot_dimension_numbers<[1], [0], [0], [1], [0, 0, 1, 1], [], []>} : vector<8x128xf32>, vector<128x128xf32>, vector<8x128xf32> -> vector<8x128xf32>
    %27 = vector.broadcast %1 : vector<1x128xf32> to vector<8x128xf32>
    %28 = arith.addf %26, %27 : vector<8x128xf32>
    %c0_30 = arith.constant 0 : index
    %c0_31 = arith.constant 0 : index
    %29 = vector.load %arg8[%c0_30, %c0_31] : memref<8x128xf32, #tpu.memory_space<vmem>>, vector<8x128xf32>
    tpu.vector_store %arg8[%c0_30, %c0_31], %28 {strides = array<i32>} : memref<8x128xf32, #tpu.memory_space<vmem>>, vector<8x128xf32>,
    return
  }
  func.func @transform_0(%arg0: i32) -> (i32, i32) {
    %c0_i32 = arith.constant 0 : i32
    %c0_i32_0 = arith.constant 0 : i32
    return %arg0, %c0_i32 : i32, i32
  }
  func.func @transform_1(%arg0: i32) -> (i32, i32) {
    %c0_i32 = arith.constant 0 : i32
    %c0_i32_0 = arith.constant 0 : i32
    %c0_i32_1 = arith.constant 0 : i32
    return %c0_i32, %c0_i32_0 : i32, i32
  }
  func.func @transform_2(%arg0: i32) -> (i32, i32) {
    %c0_i32 = arith.constant 0 : i32
    %c0_i32_0 = arith.constant 0 : i32
    %c0_i32_1 = arith.constant 0 : i32
    return %c0_i32, %c0_i32_0 : i32, i32
  }
  func.func @transform_3(%arg0: i32) -> (i32, i32) {
    %c0_i32 = arith.constant 0 : i32
    %c0_i32_0 = arith.constant 0 : i32
    %c0_i32_1 = arith.constant 0 : i32
    return %c0_i32, %c0_i32_0 : i32, i32
  }
  func.func @transform_4(%arg0: i32) -> (i32, i32) {
    %c0_i32 = arith.constant 0 : i32
    %c0_i32_0 = arith.constant 0 : i32
    %c0_i32_1 = arith.constant 0 : i32
    return %c0_i32, %c0_i32_0 : i32, i32
  }
  func.func @transform_5(%arg0: i32) -> (i32, i32) {
    %c0_i32 = arith.constant 0 : i32
    %c0_i32_0 = arith.constant 0 : i32
    %c0_i32_1 = arith.constant 0 : i32
    return %c0_i32, %c0_i32_0 : i32, i32
  }
  func.func @transform_6(%arg0: i32) -> (i32, i32) {
    %c0_i32 = arith.constant 0 : i32
    %c0_i32_0 = arith.constant 0 : i32
    %c0_i32_1 = arith.constant 0 : i32
    return %c0_i32, %c0_i32_0 : i32, i32
  }
  func.func @transform_7(%arg0: i32) -> (i32, i32) {
    %c0_i32 = arith.constant 0 : i32
    %c0_i32_0 = arith.constant 0 : i32
    return %arg0, %c0_i32 : i32, i32
  }
}

</mosaic_0001>

<llo_original>
// kernel: tpu_custom_call.1
$region0: #{tpu_custom_call.1}
  #allocation0 [shape = 'u32[]', space=smem, size = 0x4, offset = 0x4, fixed_abs, tag = 'smem constant byte address 0x4 - core index']
  #allocation1 [shape = 'u32[72,128]{1,0:T(1,128)}', space=vmem, size = 0x9000, scoped, tag = 'internal scratch']
  #allocation2 [shape = 'f32[8,128]{1,0:T(8,128)}', space=vmem, size = 0x1000, scoped, tag = 'scratch operand']
  %s0 = inlined_call_operand.hbm [shape: f32[8,128], index: 0, kind: input, shape index: {}]
  %s1 = inlined_call_operand.hbm [shape: f32[128,128], index: 1, kind: input, shape index: {}]
  %s2 = inlined_call_operand.vmem [shape: f32[1,128], index: 2, kind: input, shape index: {}]
  %s3 = inlined_call_operand.hbm [shape: f32[128,128], index: 3, kind: input, shape index: {}]
  %s4 = inlined_call_operand.vmem [shape: f32[1,128], index: 4, kind: input, shape index: {}]
  %s5 = inlined_call_operand.hbm [shape: f32[128,128], index: 5, kind: input, shape index: {}]
  %s6 = inlined_call_operand.vmem [shape: f32[1,128], index: 6, kind: input, shape index: {}]
  %s7 = inlined_call_operand.hbm [shape: f32[8,128], index: 7, kind: output, shape index: {}]
  %s8 = sld [smem:[#allocation0]]
  $region54: #{tpu_custom_call.1} parent=0
    _
  %s10 = ssub.s32 1, %s8
  %s11 = scalar_select 0, %s10, %s8
  $region1: #{tpu_custom_call.1} parent=0
    #allocation3 [shape = 'u8[4096]{0}', space=vmem, size = 0x1000, scoped, tag = 'input window, operand 0, single buffered']
    #allocation4 [shape = 's32[1]{0}', space=sflag, size = 0x4, scoped, tag = 'scoped memory for tpu_custom_call.1']
    #allocation5 [shape = 's32[1]{0}', space=sflag, size = 0x4, scoped, tag = 'scoped memory for tpu_custom_call.1']
    #allocation6 [shape = 'u8[65536]{0}', space=vmem, size = 0x10000, scoped, tag = 'input window, operand 1, single buffered']
    #allocation7 [shape = 's32[1]{0}', space=sflag, size = 0x4, scoped, tag = 'scoped memory for tpu_custom_call.1']
    #allocation8 [shape = 'u8[65536]{0}', space=vmem, size = 0x10000, scoped, tag = 'input window, operand 3, single buffered']
    #allocation9 [shape = 'u8[65536]{0}', space=vmem, size = 0x10000, scoped, tag = 'input window, operand 5, single buffered']
    #allocation10 [shape = 's32[1]{0}', space=sflag, size = 0x4, scoped, tag = 'scoped memory for tpu_custom_call.1']
    #allocation11 [shape = 'u8[4096]{0}', space=vmem, size = 0x1000, scoped, tag = 'output window, operand 0, single buffered']
    %12 = vsyncpa [#allocation4], 0
    %13 = vsyncpa [#allocation7], 0
    %14 = vsyncpa [#allocation10], 0
    %15 = vsyncpa [#allocation5], 0
    // Predicated region
    $region2: #{tpu_custom_call.1} parent=1 // pred_check
      _
    $region3: #{tpu_custom_call.1} parent=1 // pred_check_branch
      %17 = sbr.rel (0) target = $region5
    $region4: #{tpu_custom_call.1} parent=1 // pred_region
      %19 = vsyncadd [#allocation4], 0
      %s21 = sshll.u32 %s0, 4
      %s22 = int_to_ptr.hbm [resolvable:$true] %s21
      %s23 = sshll.u32 [#allocation3], 4
      %s24 = int_to_ptr.vmem [resolvable:$true] %s23
      %26 = dma.hbm_to_vmem [thread:$0]  %s22, 128, %s24, [#allocation4]
    $region5: #{tpu_custom_call.1} parent=1 // pred_fallthru
      _
    // Predicated region
    $region6: #{tpu_custom_call.1} parent=1 // pred_check
      _
    $region7: #{tpu_custom_call.1} parent=1 // pred_check_branch
      %28 = sbr.rel (0) target = $region9
    $region8: #{tpu_custom_call.1} parent=1 // pred_region
      %30 = vsyncadd [#allocation7], 0
      %s31 = sshll.u32 %s1, 4
      %s32 = int_to_ptr.hbm [resolvable:$true] %s31
      %s33 = sshll.u32 [#allocation6], 4
      %s34 = int_to_ptr.vmem [resolvable:$true] %s33
      %39 = dma.hbm_to_vmem [thread:$0]  %s32, 2048, %s34, [#allocation7], 128, 128, 8
    $region9: #{tpu_custom_call.1} parent=1 // pred_fallthru
      _
    // Predicated region
    $region10: #{tpu_custom_call.1} parent=1 // pred_check
      _
    $region11: #{tpu_custom_call.1} parent=1 // pred_check_branch
      %41 = sbr.rel (0) target = $region13
    $region12: #{tpu_custom_call.1} parent=1 // pred_region
      _
    $region13: #{tpu_custom_call.1} parent=1 // pred_fallthru
      _
    // Predicated region
    $region14: #{tpu_custom_call.1} parent=1 // pred_check
      _
    $region15: #{tpu_custom_call.1} parent=1 // pred_check_branch
      %43 = sbr.rel (0) target = $region17
    $region16: #{tpu_custom_call.1} parent=1 // pred_region
      %45 = vsyncadd [#allocation7], 0
      %s46 = sshll.u32 %s3, 4
      %s47 = int_to_ptr.hbm [resolvable:$true] %s46
      %s48 = sshll.u32 [#allocation8], 4
      %s49 = int_to_ptr.vmem [resolvable:$true] %s48
      %54 = dma.hbm_to_vmem [thread:$0]  %s47, 2048, %s49, [#allocation7], 128, 128, 8
    $region17: #{tpu_custom_call.1} parent=1 // pred_fallthru
      _
    // Predicated region
    $region18: #{tpu_custom_call.1} parent=1 // pred_check
      _
    $region19: #{tpu_custom_call.1} parent=1 // pred_check_branch
      %56 = sbr.rel (0) target = $region21
    $region20: #{tpu_custom_call.1} parent=1 // pred_region
      _
    $region21: #{tpu_custom_call.1} parent=1 // pred_fallthru
      _
    // Predicated region
    $region22: #{tpu_custom_call.1} parent=1 // pred_check
      _
    $region23: #{tpu_custom_call.1} parent=1 // pred_check_branch
      %58 = sbr.rel (0) target = $region25
    $region24: #{tpu_custom_call.1} parent=1 // pred_region
      %60 = vsyncadd [#allocation10], 0
      %s61 = sshll.u32 %s5, 4
      %s62 = int_to_ptr.hbm [resolvable:$true] %s61
      %s63 = sshll.u32 [#allocation9], 4
      %s64 = int_to_ptr.vmem [resolvable:$true] %s63
      %69 = dma.hbm_to_vmem [thread:$0]  %s62, 2048, %s64, [#allocation10], 128, 128, 8
    $region25: #{tpu_custom_call.1} parent=1 // pred_fallthru
      _
    // Predicated region
    $region26: #{tpu_custom_call.1} parent=1 // pred_check
      _
    $region27: #{tpu_custom_call.1} parent=1 // pred_check_branch
      %71 = sbr.rel (0) target = $region29
    $region28: #{tpu_custom_call.1} parent=1 // pred_region
      _
    $region29: #{tpu_custom_call.1} parent=1 // pred_fallthru
      _
    // Predicated region
    $region30: #{tpu_custom_call.1} parent=1 // pred_check
      _
    $region31: #{tpu_custom_call.1} parent=1 // pred_check_branch
      %73 = sbr.rel (0) target = $region33
    $region32: #{tpu_custom_call.1} parent=1 // pred_region
      %75 = dma.done [#allocation4], 128
    $region33: #{tpu_custom_call.1} parent=1 // pred_fallthru
      _
    // Predicated region
    $region34: #{tpu_custom_call.1} parent=1 // pred_check
      _
    $region35: #{tpu_custom_call.1} parent=1 // pred_check_branch
      %77 = sbr.rel (0) target = $region37
    $region36: #{tpu_custom_call.1} parent=1 // pred_region
      %79 = dma.done [#allocation7], 2048
    $region37: #{tpu_custom_call.1} parent=1 // pred_fallthru
      _
    // Predicated region
    $region38: #{tpu_custom_call.1} parent=1 // pred_check
      _
    $region39: #{tpu_custom_call.1} parent=1 // pred_check_branch
      %81 = sbr.rel (0) target = $region41
    $region40: #{tpu_custom_call.1} parent=1 // pred_region
      %83 = dma.done [#allocation7], 2048
    $region41: #{tpu_custom_call.1} parent=1 // pred_fallthru
      _
    // Predicated region
    $region42: #{tpu_custom_call.1} parent=1 // pred_check
      _
    $region43: #{tpu_custom_call.1} parent=1 // pred_check_branch
      %85 = sbr.rel (0) target = $region45
    $region44: #{tpu_custom_call.1} parent=1 // pred_region
      %87 = dma.done [#allocation10], 2048
    $region45: #{tpu_custom_call.1} parent=1 // pred_fallthru
      _
    %v88 = vld [vmem:[%s2] sm:$0x1]
    %v89 = vld [vmem:[%s6] sm:$0x1]
    %v90 = vld [vmem:[#allocation3] sm:$0xff]
    %v91 = vld [vmem:[#allocation6] sm:$0xff]
    %v92 = vld [vmem:[#allocation6 + $0x8] sm:$0xff]
    %v93 = vld [vmem:[#allocation6 + $0x10] sm:$0xff]
    %v94 = vld [vmem:[#allocation6 + $0x18] sm:$0xff]
    %v95 = vld [vmem:[#allocation6 + $0x20] sm:$0xff]
    %v96 = vld [vmem:[#allocation6 + $0x28] sm:$0xff]
    %v97 = vld [vmem:[#allocation6 + $0x30] sm:$0xff]
    %v98 = vld [vmem:[#allocation6 + $0x38] sm:$0xff]
    %v99 = vld [vmem:[#allocation6 + $0x40] sm:$0xff]
    %v100 = vld [vmem:[#allocation6 + $0x48] sm:$0xff]
    %v101 = vld [vmem:[#allocation6 + $0x50] sm:$0xff]
    %v102 = vld [vmem:[#allocation6 + $0x58] sm:$0xff]
    %v103 = vld [vmem:[#allocation6 + $0x60] sm:$0xff]
    %v104 = vld [vmem:[#allocation6 + $0x68] sm:$0xff]
    %v105 = vld [vmem:[#allocation6 + $0x70] sm:$0xff]
    %v106 = vld [vmem:[#allocation6 + $0x78] sm:$0xff]
    %v108 = vperm.slane %v88, 0
    %110 = vmatpush.msra.mxu0 %v106
    %111 = vmatpush.msra.mxu0 %v105
    %112 = vmatpush.msra.mxu0 %v104
    %113 = vmatpush.msra.mxu0 %v103
    %114 = vmatpush.msra.mxu0 %v102
    %115 = vmatpush.msra.mxu0 %v101
    %116 = vmatpush.msra.mxu0 %v100
    %117 = vmatpush.msra.mxu0 %v99
    %118 = vmatpush.msra.mxu0 %v98
    %119 = vmatpush.msra.mxu0 %v97
    %120 = vmatpush.msra.mxu0 %v96
    %121 = vmatpush.msra.mxu0 %v95
    %122 = vmatpush.msra.mxu0 %v94
    %123 = vmatpush.msra.mxu0 %v93
    %124 = vmatpush.msra.mxu0 %v92
    %125 = vmatpush.msra.mxu0 %v91
    %126 = vmatmul.f32.gmra.mxu0 %v90
    %v127 = vpop.f32.mrf.mxu0
    %v128 = vadd.f32 %v108, %v127
    %129 = vdwg.mxu0
    %v130 = vtanh.pop %v128
    %131 = vst [vmem:[#allocation2] sm:$0xff] %v130
    %v132 = vld [vmem:[%s4] sm:$0x1]
    %v133 = vld [vmem:[#allocation2] sm:$0xff]
    %v134 = vld [vmem:[#allocation8] sm:$0xff]
    %v135 = vld [vmem:[#allocation8 + $0x8] sm:$0xff]
    %v136 = vld [vmem:[#allocation8 + $0x10] sm:$0xff]
    %v137 = vld [vmem:[#allocation8 + $0x18] sm:$0xff]
    %v138 = vld [vmem:[#allocation8 + $0x20] sm:$0xff]
    %v139 = vld [vmem:[#allocation8 + $0x28] sm:$0xff]
    %v140 = vld [vmem:[#allocation8 + $0x30] sm:$0xff]
    %v141 = vld [vmem:[#allocation8 + $0x38] sm:$0xff]
    %v142 = vld [vmem:[#allocation8 + $0x40] sm:$0xff]
    %v143 = vld [vmem:[#allocation8 + $0x48] sm:$0xff]
    %v144 = vld [vmem:[#allocation8 + $0x50] sm:$0xff]
    %v145 = vld [vmem:[#allocation8 + $0x58] sm:$0xff]
    %v146 = vld [vmem:[#allocation8 + $0x60] sm:$0xff]
    %v147 = vld [vmem:[#allocation8 + $0x68] sm:$0xff]
    %v148 = vld [vmem:[#allocation8 + $0x70] sm:$0xff]
    %v149 = vld [vmem:[#allocation8 + $0x78] sm:$0xff]
    %v151 = vperm.slane %v132, 0
    %153 = vmatpush.msra.mxu0 %v149
    %154 = vmatpush.msra.mxu0 %v148
    %155 = vmatpush.msra.mxu0 %v147
    %156 = vmatpush.msra.mxu0 %v146
    %157 = vmatpush.msra.mxu0 %v145
    %158 = vmatpush.msra.mxu0 %v144
    %159 = vmatpush.msra.mxu0 %v143
    %160 = vmatpush.msra.mxu0 %v142
    %161 = vmatpush.msra.mxu0 %v141
    %162 = vmatpush.msra.mxu0 %v140
    %163 = vmatpush.msra.mxu0 %v139
    %164 = vmatpush.msra.mxu0 %v138
    %165 = vmatpush.msra.mxu0 %v137
    %166 = vmatpush.msra.mxu0 %v136
    %167 = vmatpush.msra.mxu0 %v135
    %168 = vmatpush.msra.mxu0 %v134
    %169 = vmatmul.f32.gmra.mxu0 %v133
    %v170 = vpop.f32.mrf.mxu0
    %v171 = vadd.f32 %v151, %v170
    %172 = vdwg.mxu0
    %v173 = vtanh.pop %v171
    %174 = vst [vmem:[#allocation2] sm:$0xff] %v173
    %v175 = vld [vmem:[#allocation2] sm:$0xff]
    %v176 = vld [vmem:[#allocation8] sm:$0xff]
    %v177 = vld [vmem:[#allocation8 + $0x8] sm:$0xff]
    %v178 = vld [vmem:[#allocation8 + $0x10] sm:$0xff]
    %v179 = vld [vmem:[#allocation8 + $0x18] sm:$0xff]
    %v180 = vld [vmem:[#allocation8 + $0x20] sm:$0xff]
    %v181 = vld [vmem:[#allocation8 + $0x28] sm:$0xff]
    %v182 = vld [vmem:[#allocation8 + $0x30] sm:$0xff]
    %v183 = vld [vmem:[#allocation8 + $0x38] sm:$0xff]
    %v184 = vld [vmem:[#allocation8 + $0x40] sm:$0xff]
    %v185 = vld [vmem:[#allocation8 + $0x48] sm:$0xff]
    %v186 = vld [vmem:[#allocation8 + $0x50] sm:$0xff]
    %v187 = vld [vmem:[#allocation8 + $0x58] sm:$0xff]
    %v188 = vld [vmem:[#allocation8 + $0x60] sm:$0xff]
    %v189 = vld [vmem:[#allocation8 + $0x68] sm:$0xff]
    %v190 = vld [vmem:[#allocation8 + $0x70] sm:$0xff]
    %v191 = vld [vmem:[#allocation8 + $0x78] sm:$0xff]
    %192 = vmatpush.msra.mxu0 %v191
    %193 = vmatpush.msra.mxu0 %v190
    %194 = vmatpush.msra.mxu0 %v189
    %195 = vmatpush.msra.mxu0 %v188
    %196 = vmatpush.msra.mxu0 %v187
    %197 = vmatpush.msra.mxu0 %v186
    %198 = vmatpush.msra.mxu0 %v185
    %199 = vmatpush.msra.mxu0 %v184
    %200 = vmatpush.msra.mxu0 %v183
    %201 = vmatpush.msra.mxu0 %v182
    %202 = vmatpush.msra.mxu0 %v181
    %203 = vmatpush.msra.mxu0 %v180
    %204 = vmatpush.msra.mxu0 %v179
    %205 = vmatpush.msra.mxu0 %v178
    %206 = vmatpush.msra.mxu0 %v177
    %207 = vmatpush.msra.mxu0 %v176
    %208 = vmatmul.f32.gmra.mxu0 %v175
    %v209 = vpop.f32.mrf.mxu0
    %v210 = vadd.f32 %v151, %v209
    %211 = vdwg.mxu0
    %v212 = vtanh.pop %v210
    %213 = vst [vmem:[#allocation2] sm:$0xff] %v212
    %v214 = vld [vmem:[#allocation2] sm:$0xff]
    %v215 = vld [vmem:[#allocation9] sm:$0xff]
    %v216 = vld [vmem:[#allocation9 + $0x8] sm:$0xff]
    %v217 = vld [vmem:[#allocation9 + $0x10] sm:$0xff]
    %v218 = vld [vmem:[#allocation9 + $0x18] sm:$0xff]
    %v219 = vld [vmem:[#allocation9 + $0x20] sm:$0xff]
    %v220 = vld [vmem:[#allocation9 + $0x28] sm:$0xff]
    %v221 = vld [vmem:[#allocation9 + $0x30] sm:$0xff]
    %v222 = vld [vmem:[#allocation9 + $0x38] sm:$0xff]
    %v223 = vld [vmem:[#allocation9 + $0x40] sm:$0xff]
    %v224 = vld [vmem:[#allocation9 + $0x48] sm:$0xff]
    %v225 = vld [vmem:[#allocation9 + $0x50] sm:$0xff]
    %v226 = vld [vmem:[#allocation9 + $0x58] sm:$0xff]
    %v227 = vld [vmem:[#allocation9 + $0x60] sm:$0xff]
    %v228 = vld [vmem:[#allocation9 + $0x68] sm:$0xff]
    %v229 = vld [vmem:[#allocation9 + $0x70] sm:$0xff]
    %v230 = vld [vmem:[#allocation9 + $0x78] sm:$0xff]
    %v232 = vperm.slane %v89, 0
    %234 = vmatpush.msra.mxu0 %v230
    %235 = vmatpush.msra.mxu0 %v229
    %236 = vmatpush.msra.mxu0 %v228
    %237 = vmatpush.msra.mxu0 %v227
    %238 = vmatpush.msra.mxu0 %v226
    %239 = vmatpush.msra.mxu0 %v225
    %240 = vmatpush.msra.mxu0 %v224
    %241 = vmatpush.msra.mxu0 %v223
    %242 = vmatpush.msra.mxu0 %v222
    %243 = vmatpush.msra.mxu0 %v221
    %244 = vmatpush.msra.mxu0 %v220
    %245 = vmatpush.msra.mxu0 %v219
    %246 = vmatpush.msra.mxu0 %v218
    %247 = vmatpush.msra.mxu0 %v217
    %248 = vmatpush.msra.mxu0 %v216
    %249 = vmatpush.msra.mxu0 %v215
    %250 = vmatmul.f32.gmra.mxu0 %v214
    %v251 = vpop.f32.mrf.mxu0
    %v252 = vadd.f32 %v232, %v251
    %253 = vdwg.mxu0
    %254 = vst [vmem:[#allocation11] sm:$0xff] %v252
    // Predicated region
    $region46: #{tpu_custom_call.1} parent=1 // pred_check
      _
    $region47: #{tpu_custom_call.1} parent=1 // pred_check_branch
      %256 = sbr.rel (0) target = $region49
    $region48: #{tpu_custom_call.1} parent=1 // pred_region
      %258 = vsyncadd [#allocation5], 0
      %s260 = sshll.u32 [#allocation11], 4
      %s261 = int_to_ptr.vmem [resolvable:$true] %s260
      %s262 = sshll.u32 %s7, 4
      %s263 = int_to_ptr.hbm [resolvable:$true] %s262
      %265 = dma.vmem_to_hbm [thread:$0]  %s261, 128, %s263, [#allocation5]
    $region49: #{tpu_custom_call.1} parent=1 // pred_fallthru
      _
    // Predicated region
    $region50: #{tpu_custom_call.1} parent=1 // pred_check
      _
    $region51: #{tpu_custom_call.1} parent=1 // pred_check_branch
      %267 = sbr.rel (0) target = $region53
    $region52: #{tpu_custom_call.1} parent=1 // pred_region
      %269 = dma.done [#allocation5], 128
    $region53: #{tpu_custom_call.1} parent=1 // pred_fallthru
      _
    %270 = vsyncpa [#allocation4], 1
    %271 = vsyncpa [#allocation7], 1
    %272 = vsyncpa [#allocation10], 1
    %273 = vsyncpa [#allocation5], 1

// kernel: tpu_custom_call.1
$region0: #{tpu_custom_call.1}
  #allocation0 [shape = 'u32[]', space=smem, size = 0x4, offset = 0x4, fixed_abs, tag = 'smem constant byte address 0x4 - core index']
  #allocation1 [shape = 'u32[72,128]{1,0:T(1,128)}', space=vmem, size = 0x9000, scoped, tag = 'internal scratch']
  #allocation2 [shape = 'f32[8,128]{1,0:T(8,128)}', space=vmem, size = 0x1000, scoped, tag = 'scratch operand']
  %s0 = inlined_call_operand.hbm [shape: f32[8,128], index: 0, kind: input, shape index: {}]
  %s1 = inlined_call_operand.hbm [shape: f32[128,128], index: 1, kind: input, shape index: {}]
  %s2 = inlined_call_operand.vmem [shape: f32[1,128], index: 2, kind: input, shape index: {}]
  %s3 = inlined_call_operand.hbm [shape: f32[128,128], index: 3, kind: input, shape index: {}]
  %s4 = inlined_call_operand.vmem [shape: f32[1,128], index: 4, kind: input, shape index: {}]
  %s5 = inlined_call_operand.hbm [shape: f32[128,128], index: 5, kind: input, shape index: {}]
  %s6 = inlined_call_operand.vmem [shape: f32[1,128], index: 6, kind: input, shape index: {}]
  %s7 = inlined_call_operand.hbm [shape: f32[8,128], index: 7, kind: output, shape index: {}]
  %s8 = sld [smem:[#allocation0]]
  $region54: #{tpu_custom_call.1} parent=0
    _
  %s10 = ssub.s32 1, %s8
  %s11 = scalar_select 0, %s10, %s8
  $region1: #{tpu_custom_call.1} parent=0
    #allocation3 [shape = 'u8[4096]{0}', space=vmem, size = 0x1000, scoped, tag = 'input window, operand 0, single buffered']
    #allocation4 [shape = 's32[1]{0}', space=sflag, size = 0x4, scoped, tag = 'scoped memory for tpu_custom_call.1']
    #allocation5 [shape = 's32[1]{0}', space=sflag, size = 0x4, scoped, tag = 'scoped memory for tpu_custom_call.1']
    #allocation6 [shape = 'u8[65536]{0}', space=vmem, size = 0x10000, scoped, tag = 'input window, operand 1, single buffered']
    #allocation7 [shape = 's32[1]{0}', space=sflag, size = 0x4, scoped, tag = 'scoped memory for tpu_custom_call.1']
    #allocation8 [shape = 'u8[65536]{0}', space=vmem, size = 0x10000, scoped, tag = 'input window, operand 3, single buffered']
    #allocation9 [shape = 'u8[65536]{0}', space=vmem, size = 0x10000, scoped, tag = 'input window, operand 5, single buffered']
    #allocation10 [shape = 's32[1]{0}', space=sflag, size = 0x4, scoped, tag = 'scoped memory for tpu_custom_call.1']
    #allocation11 [shape = 'u8[4096]{0}', space=vmem, size = 0x1000, scoped, tag = 'output window, operand 0, single buffered']
    %12 = vsyncpa [#allocation4], 0
    %13 = vsyncpa [#allocation7], 0
    %14 = vsyncpa [#allocation10], 0
    %15 = vsyncpa [#allocation5], 0
    // Predicated region
    $region2: #{tpu_custom_call.1} parent=1 // pred_check
      _
    $region3: #{tpu_custom_call.1} parent=1 // pred_check_branch
      %17 = sbr.rel (0) target = $region5
    $region4: #{tpu_custom_call.1} parent=1 // pred_region
      %19 = vsyncadd [#allocation4], 0
      %s21 = sshll.u32 %s0, 4
      %s22 = int_to_ptr.hbm [resolvable:$true] %s21
      %s23 = sshll.u32 [#allocation3], 4
      %s24 = int_to_ptr.vmem [resolvable:$true] %s23
      %26 = dma.hbm_to_vmem [thread:$0]  %s22, 128, %s24, [#allocation4]
    $region5: #{tpu_custom_call.1} parent=1 // pred_fallthru
      _
    // Predicated region
    $region6: #{tpu_custom_call.1} parent=1 // pred_check
      _
    $region7: #{tpu_custom_call.1} parent=1 // pred_check_branch
      %28 = sbr.rel (0) target = $region9
    $region8: #{tpu_custom_call.1} parent=1 // pred_region
      %30 = vsyncadd [#allocation7], 0
      %s31 = sshll.u32 %s1, 4
      %s32 = int_to_ptr.hbm [resolvable:$true] %s31
      %s33 = sshll.u32 [#allocation6], 4
      %s34 = int_to_ptr.vmem [resolvable:$true] %s33
      %39 = dma.hbm_to_vmem [thread:$0]  %s32, 2048, %s34, [#allocation7], 128, 128, 8
    $region9: #{tpu_custom_call.1} parent=1 // pred_fallthru
      _
    // Predicated region
    $region10: #{tpu_custom_call.1} parent=1 // pred_check
      _
    $region11: #{tpu_custom_call.1} parent=1 // pred_check_branch
      %41 = sbr.rel (0) target = $region13
    $region12: #{tpu_custom_call.1} parent=1 // pred_region
      _
    $region13: #{tpu_custom_call.1} parent=1 // pred_fallthru
      _
    // Predicated region
    $region14: #{tpu_custom_call.1} parent=1 // pred_check
      _
    $region15: #{tpu_custom_call.1} parent=1 // pred_check_branch
      %43 = sbr.rel (0) target = $region17
    $region16: #{tpu_custom_call.1} parent=1 // pred_region
      %45 = vsyncadd [#allocation7], 0
      %s46 = sshll.u32 %s3, 4
      %s47 = int_to_ptr.hbm [resolvable:$true] %s46
      %s48 = sshll.u32 [#allocation8], 4
      %s49 = int_to_ptr.vmem [resolvable:$true] %s48
      %54 = dma.hbm_to_vmem [thread:$0]  %s47, 2048, %s49, [#allocation7], 128, 128, 8
    $region17: #{tpu_custom_call.1} parent=1 // pred_fallthru
      _
    // Predicated region
    $region18: #{tpu_custom_call.1} parent=1 // pred_check
      _
    $region19: #{tpu_custom_call.1} parent=1 // pred_check_branch
      %56 = sbr.rel (0) target = $region21
    $region20: #{tpu_custom_call.1} parent=1 // pred_region
      _
    $region21: #{tpu_custom_call.1} parent=1 // pred_fallthru
      _
    // Predicated region
    $region22: #{tpu_custom_call.1} parent=1 // pred_check
      _
    $region23: #{tpu_custom_call.1} parent=1 // pred_check_branch
      %58 = sbr.rel (0) target = $region25
    $region24: #{tpu_custom_call.1} parent=1 // pred_region
      %60 = vsyncadd [#allocation10], 0
      %s61 = sshll.u32 %s5, 4
      %s62 = int_to_ptr.hbm [resolvable:$true] %s61
      %s63 = sshll.u32 [#allocation9], 4
      %s64 = int_to_ptr.vmem [resolvable:$true] %s63
      %69 = dma.hbm_to_vmem [thread:$0]  %s62, 2048, %s64, [#allocation10], 128, 128, 8
    $region25: #{tpu_custom_call.1} parent=1 // pred_fallthru
      _
    // Predicated region
    $region26: #{tpu_custom_call.1} parent=1 // pred_check
      _
    $region27: #{tpu_custom_call.1} parent=1 // pred_check_branch
      %71 = sbr.rel (0) target = $region29
    $region28: #{tpu_custom_call.1} parent=1 // pred_region
      _
    $region29: #{tpu_custom_call.1} parent=1 // pred_fallthru
      _
    // Predicated region
    $region30: #{tpu_custom_call.1} parent=1 // pred_check
      _
    $region31: #{tpu_custom_call.1} parent=1 // pred_check_branch
      %73 = sbr.rel (0) target = $region33
    $region32: #{tpu_custom_call.1} parent=1 // pred_region
      %75 = dma.done [#allocation4], 128
    $region33: #{tpu_custom_call.1} parent=1 // pred_fallthru
      _
    // Predicated region
    $region34: #{tpu_custom_call.1} parent=1 // pred_check
      _
    $region35: #{tpu_custom_call.1} parent=1 // pred_check_branch
      %77 = sbr.rel (0) target = $region37
    $region36: #{tpu_custom_call.1} parent=1 // pred_region
      %79 = dma.done [#allocation7], 2048
    $region37: #{tpu_custom_call.1} parent=1 // pred_fallthru
      _
    // Predicated region
    $region38: #{tpu_custom_call.1} parent=1 // pred_check
      _
    $region39: #{tpu_custom_call.1} parent=1 // pred_check_branch
      %81 = sbr.rel (0) target = $region41
    $region40: #{tpu_custom_call.1} parent=1 // pred_region
      %83 = dma.done [#allocation7], 2048
    $region41: #{tpu_custom_call.1} parent=1 // pred_fallthru
      _
    // Predicated region
    $region42: #{tpu_custom_call.1} parent=1 // pred_check
      _
    $region43: #{tpu_custom_call.1} parent=1 // pred_check_branch
      %85 = sbr.rel (0) target = $region45
    $region44: #{tpu_custom_call.1} parent=1 // pred_region
      %87 = dma.done [#allocation10], 2048
    $region45: #{tpu_custom_call.1} parent=1 // pred_fallthru
      _
    %v88 = vld [vmem:[%s2] sm:$0x1]
    %v89 = vld [vmem:[%s6] sm:$0x1]
    %v90 = vld [vmem:[#allocation3] sm:$0xff]
    %v91 = vld [vmem:[#allocation6] sm:$0xff]
    %v92 = vld [vmem:[#allocation6 + $0x8] sm:$0xff]
    %v93 = vld [vmem:[#allocation6 + $0x10] sm:$0xff]
    %v94 = vld [vmem:[#allocation6 + $0x18] sm:$0xff]
    %v95 = vld [vmem:[#allocation6 + $0x20] sm:$0xff]
    %v96 = vld [vmem:[#allocation6 + $0x28] sm:$0xff]
    %v97 = vld [vmem:[#allocation6 + $0x30] sm:$0xff]
    %v98 = vld [vmem:[#allocation6 + $0x38] sm:$0xff]
    %v99 = vld [vmem:[#allocation6 + $0x40] sm:$0xff]
    %v100 = vld [vmem:[#allocation6 + $0x48] sm:$0xff]
    %v101 = vld [vmem:[#allocation6 + $0x50] sm:$0xff]
    %v102 = vld [vmem:[#allocation6 + $0x58] sm:$0xff]
    %v103 = vld [vmem:[#allocation6 + $0x60] sm:$0xff]
    %v104 = vld [vmem:[#allocation6 + $0x68] sm:$0xff]
    %v105 = vld [vmem:[#allocation6 + $0x70] sm:$0xff]
    %v106 = vld [vmem:[#allocation6 + $0x78] sm:$0xff]
    %v108 = vperm.slane %v88, 0
    %110 = vmatpush.msra.mxu0 %v106
    %111 = vmatpush.msra.mxu0 %v105
    %112 = vmatpush.msra.mxu0 %v104
    %113 = vmatpush.msra.mxu0 %v103
    %114 = vmatpush.msra.mxu0 %v102
    %115 = vmatpush.msra.mxu0 %v101
    %116 = vmatpush.msra.mxu0 %v100
    %117 = vmatpush.msra.mxu0 %v99
    %118 = vmatpush.msra.mxu0 %v98
    %119 = vmatpush.msra.mxu0 %v97
    %120 = vmatpush.msra.mxu0 %v96
    %121 = vmatpush.msra.mxu0 %v95
    %122 = vmatpush.msra.mxu0 %v94
    %123 = vmatpush.msra.mxu0 %v93
    %124 = vmatpush.msra.mxu0 %v92
    %125 = vmatpush.msra.mxu0 %v91
    %126 = vmatmul.f32.gmra.mxu0 %v90
    %v127 = vpop.f32.mrf.mxu0
    %v128 = vadd.f32 %v108, %v127
    %129 = vdwg.mxu0
    %v130 = vtanh.pop %v128
    %131 = vst [vmem:[#allocation2] sm:$0xff] %v130
    %v132 = vld [vmem:[%s4] sm:$0x1]
    %v133 = vld [vmem:[#allocation2] sm:$0xff]
    %v134 = vld [vmem:[#allocation8] sm:$0xff]
    %v135 = vld [vmem:[#allocation8 + $0x8] sm:$0xff]
    %v136 = vld [vmem:[#allocation8 + $0x10] sm:$0xff]
    %v137 = vld [vmem:[#allocation8 + $0x18] sm:$0xff]
    %v138 = vld [vmem:[#allocation8 + $0x20] sm:$0xff]
    %v139 = vld [vmem:[#allocation8 + $0x28] sm:$0xff]
    %v140 = vld [vmem:[#allocation8 + $0x30] sm:$0xff]
    %v141 = vld [vmem:[#allocation8 + $0x38] sm:$0xff]
    %v142 = vld [vmem:[#allocation8 + $0x40] sm:$0xff]
    %v143 = vld [vmem:[#allocation8 + $0x48] sm:$0xff]
    %v144 = vld [vmem:[#allocation8 + $0x50] sm:$0xff]
    %v145 = vld [vmem:[#allocation8 + $0x58] sm:$0xff]
    %v146 = vld [vmem:[#allocation8 + $0x60] sm:$0xff]
    %v147 = vld [vmem:[#allocation8 + $0x68] sm:$0xff]
    %v148 = vld [vmem:[#allocation8 + $0x70] sm:$0xff]
    %v149 = vld [vmem:[#allocation8 + $0x78] sm:$0xff]
    %v151 = vperm.slane %v132, 0
    %153 = vmatpush.msra.mxu0 %v149
    %154 = vmatpush.msra.mxu0 %v148
    %155 = vmatpush.msra.mxu0 %v147
    %156 = vmatpush.msra.mxu0 %v146
    %157 = vmatpush.msra.mxu0 %v145
    %158 = vmatpush.msra.mxu0 %v144
    %159 = vmatpush.msra.mxu0 %v143
    %160 = vmatpush.msra.mxu0 %v142
    %161 = vmatpush.msra.mxu0 %v141
    %162 = vmatpush.msra.mxu0 %v140
    %163 = vmatpush.msra.mxu0 %v139
    %164 = vmatpush.msra.mxu0 %v138
    %165 = vmatpush.msra.mxu0 %v137
    %166 = vmatpush.msra.mxu0 %v136
    %167 = vmatpush.msra.mxu0 %v135
    %168 = vmatpush.msra.mxu0 %v134
    %169 = vmatmul.f32.gmra.mxu0 %v133
    %v170 = vpop.f32.mrf.mxu0
    %v171 = vadd.f32 %v151, %v170
    %172 = vdwg.mxu0
    %v173 = vtanh.pop %v171
    %174 = vst [vmem:[#allocation2] sm:$0xff] %v173
    %v175 = vld [vmem:[#allocation2] sm:$0xff]
    %v176 = vld [vmem:[#allocation8] sm:$0xff]
    %v177 = vld [vmem:[#allocation8 + $0x8] sm:$0xff]
    %v178 = vld [vmem:[#allocation8 + $0x10] sm:$0xff]
    %v179 = vld [vmem:[#allocation8 + $0x18] sm:$0xff]
    %v180 = vld [vmem:[#allocation8 + $0x20] sm:$0xff]
    %v181 = vld [vmem:[#allocation8 + $0x28] sm:$0xff]
    %v182 = vld [vmem:[#allocation8 + $0x30] sm:$0xff]
    %v183 = vld [vmem:[#allocation8 + $0x38] sm:$0xff]
    %v184 = vld [vmem:[#allocation8 + $0x40] sm:$0xff]
    %v185 = vld [vmem:[#allocation8 + $0x48] sm:$0xff]
    %v186 = vld [vmem:[#allocation8 + $0x50] sm:$0xff]
    %v187 = vld [vmem:[#allocation8 + $0x58] sm:$0xff]
    %v188 = vld [vmem:[#allocation8 + $0x60] sm:$0xff]
    %v189 = vld [vmem:[#allocation8 + $0x68] sm:$0xff]
    %v190 = vld [vmem:[#allocation8 + $0x70] sm:$0xff]
    %v191 = vld [vmem:[#allocation8 + $0x78] sm:$0xff]
    %192 = vmatpush.msra.mxu0 %v191
    %193 = vmatpush.msra.mxu0 %v190
    %194 = vmatpush.msra.mxu0 %v189
    %195 = vmatpush.msra.mxu0 %v188
    %196 = vmatpush.msra.mxu0 %v187
    %197 = vmatpush.msra.mxu0 %v186
    %198 = vmatpush.msra.mxu0 %v185
    %199 = vmatpush.msra.mxu0 %v184
    %200 = vmatpush.msra.mxu0 %v183
    %201 = vmatpush.msra.mxu0 %v182
    %202 = vmatpush.msra.mxu0 %v181
    %203 = vmatpush.msra.mxu0 %v180
    %204 = vmatpush.msra.mxu0 %v179
    %205 = vmatpush.msra.mxu0 %v178
    %206 = vmatpush.msra.mxu0 %v177
    %207 = vmatpush.msra.mxu0 %v176
    %208 = vmatmul.f32.gmra.mxu0 %v175
    %v209 = vpop.f32.mrf.mxu0
    %v210 = vadd.f32 %v151, %v209
    %211 = vdwg.mxu0
    %v212 = vtanh.pop %v210
    %213 = vst [vmem:[#allocation2] sm:$0xff] %v212
    %v214 = vld [vmem:[#allocation2] sm:$0xff]
    %v215 = vld [vmem:[#allocation9] sm:$0xff]
    %v216 = vld [vmem:[#allocation9 + $0x8] sm:$0xff]
    %v217 = vld [vmem:[#allocation9 + $0x10] sm:$0xff]
    %v218 = vld [vmem:[#allocation9 + $0x18] sm:$0xff]
    %v219 = vld [vmem:[#allocation9 + $0x20] sm:$0xff]
    %v220 = vld [vmem:[#allocation9 + $0x28] sm:$0xff]
    %v221 = vld [vmem:[#allocation9 + $0x30] sm:$0xff]
    %v222 = vld [vmem:[#allocation9 + $0x38] sm:$0xff]
    %v223 = vld [vmem:[#allocation9 + $0x40] sm:$0xff]
    %v224 = vld [vmem:[#allocation9 + $0x48] sm:$0xff]
    %v225 = vld [vmem:[#allocation9 + $0x50] sm:$0xff]
    %v226 = vld [vmem:[#allocation9 + $0x58] sm:$0xff]
    %v227 = vld [vmem:[#allocation9 + $0x60] sm:$0xff]
    %v228 = vld [vmem:[#allocation9 + $0x68] sm:$0xff]
    %v229 = vld [vmem:[#allocation9 + $0x70] sm:$0xff]
    %v230 = vld [vmem:[#allocation9 + $0x78] sm:$0xff]
    %v232 = vperm.slane %v89, 0
    %234 = vmatpush.msra.mxu0 %v230
    %235 = vmatpush.msra.mxu0 %v229
    %236 = vmatpush.msra.mxu0 %v228
    %237 = vmatpush.msra.mxu0 %v227
    %238 = vmatpush.msra.mxu0 %v226
    %239 = vmatpush.msra.mxu0 %v225
    %240 = vmatpush.msra.mxu0 %v224
    %241 = vmatpush.msra.mxu0 %v223
    %242 = vmatpush.msra.mxu0 %v222
    %243 = vmatpush.msra.mxu0 %v221
    %244 = vmatpush.msra.mxu0 %v220
    %245 = vmatpush.msra.mxu0 %v219
    %246 = vmatpush.msra.mxu0 %v218
    %247 = vmatpush.msra.mxu0 %v217
    %248 = vmatpush.msra.mxu0 %v216
    %249 = vmatpush.msra.mxu0 %v215
    %250 = vmatmul.f32.gmra.mxu0 %v214
    %v251 = vpop.f32.mrf.mxu0
    %v252 = vadd.f32 %v232, %v251
    %253 = vdwg.mxu0
    %254 = vst [vmem:[#allocation11] sm:$0xff] %v252
    // Predicated region
    $region46: #{tpu_custom_call.1} parent=1 // pred_check
      _
    $region47: #{tpu_custom_call.1} parent=1 // pred_check_branch
      %256 = sbr.rel (0) target = $region49
    $region48: #{tpu_custom_call.1} parent=1 // pred_region
      %258 = vsyncadd [#allocation5], 0
      %s260 = sshll.u32 [#allocation11], 4
      %s261 = int_to_ptr.vmem [resolvable:$true] %s260
      %s262 = sshll.u32 %s7, 4
      %s263 = int_to_ptr.hbm [resolvable:$true] %s262
      %265 = dma.vmem_to_hbm [thread:$0]  %s261, 128, %s263, [#allocation5]
    $region49: #{tpu_custom_call.1} parent=1 // pred_fallthru
      _
    // Predicated region
    $region50: #{tpu_custom_call.1} parent=1 // pred_check
      _
    $region51: #{tpu_custom_call.1} parent=1 // pred_check_branch
      %267 = sbr.rel (0) target = $region53
    $region52: #{tpu_custom_call.1} parent=1 // pred_region
      %269 = dma.done [#allocation5], 128
    $region53: #{tpu_custom_call.1} parent=1 // pred_fallthru
      _
    %270 = vsyncpa [#allocation4], 1
    %271 = vsyncpa [#allocation7], 1
    %272 = vsyncpa [#allocation10], 1
    %273 = vsyncpa [#allocation5], 1

</llo_original>
